<compile_context>
chip_gen: v7x
topology: tpu7x:2x2x1
jax: 0.10.0
libtpu: 0.0.40
codegen_flags: <defaults>
</compile_context>

<pallas_src>
import jax
import jax.numpy as jnp
from jax.experimental import pallas as pl
from jax.experimental.pallas import tpu as pltpu


def _as_f32(x):
    # No-op for f32 inputs; one cast after load if someone passes bf16 etc.
    return x if x.dtype == jnp.float32 else x.astype(jnp.float32)


def _kl_partial_kernel(mu_q_ref, sig_q_ref, mu_p_ref, sig_p_ref, out_ref):
    mu_q = _as_f32(mu_q_ref[...])
    sig_q = _as_f32(sig_q_ref[...])
    mu_p = _as_f32(mu_p_ref[...])
    sig_p = _as_f32(sig_p_ref[...])

    var_q = sig_q * sig_q
    var_p = sig_p * sig_p
    diff = mu_q - mu_p

    # Elementwise KL(N(mu_q, sig_q) || N(mu_p, sig_p)); single log, exact divide.
    kl = jnp.log(sig_p / sig_q) + 0.5 * (var_q + diff * diff) / var_p - 0.5

    # Reduce the (tile_b, D) tile to a lane-dense (8, D) partial sum using only
    # VPU adds (grouping consecutive sublanes is layout-free). The final
    # cross-lane/sublane reduction happens once in the wrapper.
    tb, d = kl.shape
    out_ref[...] = jnp.sum(kl.reshape(tb // 8, 8, d), axis=0)


def _round_up(x, m):
    return ((x + m - 1) // m) * m


def kl_loss(mu_q, sig_q, mu_p, sig_p):
    """Mean KL divergence between diagonal Normals q and p. Returns scalar f32."""
    assert mu_q.shape == sig_q.shape == mu_p.shape == sig_p.shape
    B, D = mu_q.shape
    total_n = B * D

    # Tile sizing: ~1 MiB f32 per input tile (tile_b * D elements), so
    # 4 inputs x 2 pipeline buffers ~= 8 MiB VMEM — safe on v5e/v6e/v7x.
    max_tile_elems = 2048 * 128
    tile_b = max(8, (max_tile_elems // max(D, 1)) // 8 * 8)
    tile_b = min(tile_b, _round_up(B, 8))

    # Pad batch to a multiple of tile_b. Padding with mu=0, sigma=1 gives
    # exactly zero KL contribution, so the sum is unaffected.
    B_pad = _round_up(B, tile_b)
    if B_pad != B:
        pad = B_pad - B
        mu_q = jnp.pad(mu_q, ((0, pad), (0, 0)))
        mu_p = jnp.pad(mu_p, ((0, pad), (0, 0)))
        sig_q = jnp.pad(sig_q, ((0, pad), (0, 0)), constant_values=1.0)
        sig_p = jnp.pad(sig_p, ((0, pad), (0, 0)), constant_values=1.0)

    num_tiles = B_pad // tile_b
    in_spec = pl.BlockSpec((tile_b, D), lambda i: (i, 0))

    elem_bytes = jnp.dtype(mu_q.dtype).itemsize
    cost = pl.CostEstimate(
        flops=10 * B_pad * D,
        transcendentals=2 * B_pad * D,
        bytes_accessed=4 * B_pad * D * elem_bytes + num_tiles * 8 * D * 4,
    )

    partials = pl.pallas_call(
        _kl_partial_kernel,
        out_shape=jax.ShapeDtypeStruct((num_tiles * 8, D), jnp.float32),
        grid_spec=pltpu.PrefetchScalarGridSpec(
            num_scalar_prefetch=0,
            grid=(num_tiles,),
            in_specs=[in_spec, in_spec, in_spec, in_spec],
            out_specs=pl.BlockSpec((8, D), lambda i: (i, 0)),
        ),
        compiler_params=pltpu.CompilerParams(
            # Independent per-tile partial sums -> shardable across TensorCores.
            dimension_semantics=("parallel",),
        ),
        cost_estimate=cost,
    )(mu_q, sig_q, mu_p, sig_p)

    # Tiny final reduction + mean (over the TRUE element count, not padded).
    return jnp.sum(partials) / jnp.float32(total_n)


def _reference(mu_q, sig_q, mu_p, sig_p):
    return jnp.mean(jnp.log(sig_p) - jnp.log(sig_q)
                    + (sig_q ** 2 + (mu_q - mu_p) ** 2) / (2.0 * sig_p ** 2) - 0.5)


if __name__ == "__main__":
    key = jax.random.PRNGKey(0)

    # Case 1: small, tile-aligned shapes.
    k1, k2, k3, k4, k5, k6, k7, k8 = jax.random.split(key, 8)
    B, D = 16, 128
    mu_q = jax.random.normal(k1, (B, D), dtype=jnp.float32)
    mu_p = jax.random.normal(k2, (B, D), dtype=jnp.float32)
    sig_q = jax.nn.softplus(jax.random.normal(k3, (B, D), dtype=jnp.float32)) + 1e-3
    sig_p = jax.nn.softplus(jax.random.normal(k4, (B, D), dtype=jnp.float32)) + 1e-3

    loss = kl_loss(mu_q, sig_q, mu_p, sig_p)
    jax.block_until_ready(loss)
    ref = _reference(mu_q, sig_q, mu_p, sig_p)
    assert jnp.allclose(loss, ref, rtol=1e-5, atol=1e-5), (loss, ref)

    # Case 2: unaligned batch / narrow latent dim (exercises padding path).
    B2, D2 = 30, 64
    mu_q2 = jax.random.normal(k5, (B2, D2), dtype=jnp.float32)
    mu_p2 = jax.random.normal(k6, (B2, D2), dtype=jnp.float32)
    sig_q2 = jax.nn.softplus(jax.random.normal(k7, (B2, D2), dtype=jnp.float32)) + 1e-3
    sig_p2 = jax.nn.softplus(jax.random.normal(k8, (B2, D2), dtype=jnp.float32)) + 1e-3

    loss2 = kl_loss(mu_q2, sig_q2, mu_p2, sig_p2)
    jax.block_until_ready(loss2)
    ref2 = _reference(mu_q2, sig_q2, mu_p2, sig_p2)
    assert jnp.allclose(loss2, ref2, rtol=1e-5, atol=1e-5), (loss2, ref2)

    print("KERNEL_OK")
</pallas_src>

<mosaic_0001>
module attributes {stable_mosaic.version = 11 : i64} {
  func.func @_kl_partial_kernel(%arg0: i32, %arg1: memref<16x128xf32, #tpu.memory_space<vmem>>, %arg2: memref<16x128xf32, #tpu.memory_space<vmem>>, %arg3: memref<16x128xf32, #tpu.memory_space<vmem>>, %arg4: memref<16x128xf32, #tpu.memory_space<vmem>>, %arg5: memref<8x128xf32, #tpu.memory_space<vmem>>) attributes {dimension_semantics = [#tpu.dimension_semantics<parallel>], iteration_bounds = array<i64: 1>, scalar_prefetch = 0 : i64, scratch_operands = 0 : i64, tpu.core_type = #tpu.core_type<tc>, window_params = [{transform_indices = @transform_0, window_bounds = array<i64: 16, 128>}, {transform_indices = @transform_1, window_bounds = array<i64: 16, 128>}, {transform_indices = @transform_2, window_bounds = array<i64: 16, 128>}, {transform_indices = @transform_3, window_bounds = array<i64: 16, 128>}, {transform_indices = @transform_4, window_bounds = array<i64: 8, 128>}]} {
    %c0 = arith.constant 0 : index
    %c0_0 = arith.constant 0 : index
    %0 = vector.load %arg1[%c0, %c0_0] : memref<16x128xf32, #tpu.memory_space<vmem>>, vector<16x128xf32>
    %c0_1 = arith.constant 0 : index
    %c0_2 = arith.constant 0 : index
    %1 = vector.load %arg2[%c0_1, %c0_2] : memref<16x128xf32, #tpu.memory_space<vmem>>, vector<16x128xf32>
    %c0_3 = arith.constant 0 : index
    %c0_4 = arith.constant 0 : index
    %2 = vector.load %arg3[%c0_3, %c0_4] : memref<16x128xf32, #tpu.memory_space<vmem>>, vector<16x128xf32>
    %c0_5 = arith.constant 0 : index
    %c0_6 = arith.constant 0 : index
    %3 = vector.load %arg4[%c0_5, %c0_6] : memref<16x128xf32, #tpu.memory_space<vmem>>, vector<16x128xf32>
    %4 = arith.mulf %1, %1 : vector<16x128xf32>
    %5 = arith.mulf %3, %3 : vector<16x128xf32>
    %6 = arith.subf %0, %2 : vector<16x128xf32>
    %7 = arith.divf %3, %1 : vector<16x128xf32>
    %8 = math.log %7 : vector<16x128xf32>
    %9 = arith.mulf %6, %6 : vector<16x128xf32>
    %10 = arith.addf %4, %9 : vector<16x128xf32>
    %cst = arith.constant 5.000000e-01 : f32
    %11 = vector.broadcast %cst : f32 to vector<16x128xf32>
    %12 = arith.mulf %11, %10 : vector<16x128xf32>
    %13 = arith.divf %12, %5 : vector<16x128xf32>
    %14 = arith.addf %8, %13 : vector<16x128xf32>
    %cst_7 = arith.constant 5.000000e-01 : f32
    %15 = vector.broadcast %cst_7 : f32 to vector<16x128xf32>
    %16 = arith.subf %14, %15 : vector<16x128xf32>
    %17 = vector.shape_cast %16 : vector<16x128xf32> to vector<2x8x128xf32>
    %cst_8 = arith.constant dense<0.000000e+00> : vector<8x128xf32>
    %18 = vector.multi_reduction <add>, %17, %cst_8 [0] : vector<2x8x128xf32> to vector<8x128xf32>
    %c0_9 = arith.constant 0 : index
    %c0_10 = arith.constant 0 : index
    %19 = vector.load %arg5[%c0_9, %c0_10] : memref<8x128xf32, #tpu.memory_space<vmem>>, vector<8x128xf32>
    tpu.vector_store %arg5[%c0_9, %c0_10], %18 {strides = array<i32>} : memref<8x128xf32, #tpu.memory_space<vmem>>, vector<8x128xf32>,
    return
  }
  func.func @transform_0(%arg0: i32) -> (i32, i32) {
    %c0_i32 = arith.constant 0 : i32
    %c0_i32_0 = arith.constant 0 : i32
    return %arg0, %c0_i32 : i32, i32
  }
  func.func @transform_1(%arg0: i32) -> (i32, i32) {
    %c0_i32 = arith.constant 0 : i32
    %c0_i32_0 = arith.constant 0 : i32
    return %arg0, %c0_i32 : i32, i32
  }
  func.func @transform_2(%arg0: i32) -> (i32, i32) {
    %c0_i32 = arith.constant 0 : i32
    %c0_i32_0 = arith.constant 0 : i32
    return %arg0, %c0_i32 : i32, i32
  }
  func.func @transform_3(%arg0: i32) -> (i32, i32) {
    %c0_i32 = arith.constant 0 : i32
    %c0_i32_0 = arith.constant 0 : i32
    return %arg0, %c0_i32 : i32, i32
  }
  func.func @transform_4(%arg0: i32) -> (i32, i32) {
    %c0_i32 = arith.constant 0 : i32
    %c0_i32_0 = arith.constant 0 : i32
    return %arg0, %c0_i32 : i32, i32
  }
}

</mosaic_0001>

<llo_original>
// kernel: tpu_custom_call.1
$region0: #{tpu_custom_call.1}
  #allocation0 [shape = 'u32[]', space=smem, size = 0x4, offset = 0x4, fixed_abs, tag = 'smem constant byte address 0x4 - core index']
  #allocation1 [shape = 'u32[144,128]{1,0:T(1,128)}', space=vmem, size = 0x12000, scoped, tag = 'internal scratch']
  %s0 = inlined_call_operand.hbm [shape: f32[16,128], index: 0, kind: input, shape index: {}]
  %s1 = inlined_call_operand.hbm [shape: f32[16,128], index: 1, kind: input, shape index: {}]
  %s2 = inlined_call_operand.hbm [shape: f32[16,128], index: 2, kind: input, shape index: {}]
  %s3 = inlined_call_operand.hbm [shape: f32[16,128], index: 3, kind: input, shape index: {}]
  %s4 = inlined_call_operand.hbm [shape: f32[8,128], index: 4, kind: output, shape index: {}]
  %s5 = sld [smem:[#allocation0]]
  $region42: #{tpu_custom_call.1} parent=0
    _
  %s7 = ssub.s32 1, %s5
  %s8 = scalar_select 0, %s7, %s5
  $region1: #{tpu_custom_call.1} parent=0
    #allocation2 [shape = 'u8[8192]{0}', space=vmem, size = 0x2000, scoped, tag = 'input window, operand 0, single buffered']
    #allocation3 [shape = 's32[1]{0}', space=sflag, size = 0x4, scoped, tag = 'scoped memory for tpu_custom_call.1']
    #allocation4 [shape = 's32[1]{0}', space=sflag, size = 0x4, scoped, tag = 'scoped memory for tpu_custom_call.1']
    #allocation5 [shape = 'u8[8192]{0}', space=vmem, size = 0x2000, scoped, tag = 'input window, operand 1, single buffered']
    #allocation6 [shape = 's32[1]{0}', space=sflag, size = 0x4, scoped, tag = 'scoped memory for tpu_custom_call.1']
    #allocation7 [shape = 'u8[8192]{0}', space=vmem, size = 0x2000, scoped, tag = 'input window, operand 2, single buffered']
    #allocation8 [shape = 'u8[8192]{0}', space=vmem, size = 0x2000, scoped, tag = 'input window, operand 3, single buffered']
    #allocation9 [shape = 's32[1]{0}', space=sflag, size = 0x4, scoped, tag = 'scoped memory for tpu_custom_call.1']
    #allocation10 [shape = 'u8[4096]{0}', space=vmem, size = 0x1000, scoped, tag = 'output window, operand 0, single buffered']
    %9 = vsyncpa [#allocation3], 0
    %10 = vsyncpa [#allocation6], 0
    %11 = vsyncpa [#allocation9], 0
    %12 = vsyncpa [#allocation4], 0
    // Predicated region
    $region2: #{tpu_custom_call.1} parent=1 // pred_check
      _
    $region3: #{tpu_custom_call.1} parent=1 // pred_check_branch
      %14 = sbr.rel (0) target = $region5
    $region4: #{tpu_custom_call.1} parent=1 // pred_region
      %s16 = ssub.s32 256, 256
      %17 = vsyncadd [#allocation3], %s16
      %s18 = sshll.u32 [#allocation2], 4
      %s19 = int_to_ptr.vmem [resolvable:$true] %s18
      %24 = dma.hbm_to_vmem [thread:$0]  %s0, 256, %s19, [#allocation3], 128, 128, 8
    $region5: #{tpu_custom_call.1} parent=1 // pred_fallthru
      _
    // Predicated region
    $region6: #{tpu_custom_call.1} parent=1 // pred_check
      _
    $region7: #{tpu_custom_call.1} parent=1 // pred_check_branch
      %26 = sbr.rel (0) target = $region9
    $region8: #{tpu_custom_call.1} parent=1 // pred_region
      %s28 = ssub.s32 256, 256
      %29 = vsyncadd [#allocation6], %s28
      %s30 = sshll.u32 [#allocation5], 4
      %s31 = int_to_ptr.vmem [resolvable:$true] %s30
      %36 = dma.hbm_to_vmem [thread:$0]  %s1, 256, %s31, [#allocation6], 128, 128, 8
    $region9: #{tpu_custom_call.1} parent=1 // pred_fallthru
      _
    // Predicated region
    $region10: #{tpu_custom_call.1} parent=1 // pred_check
      _
    $region11: #{tpu_custom_call.1} parent=1 // pred_check_branch
      %38 = sbr.rel (0) target = $region13
    $region12: #{tpu_custom_call.1} parent=1 // pred_region
      %s40 = ssub.s32 256, 256
      %41 = vsyncadd [#allocation6], %s40
      %s42 = sshll.u32 [#allocation7], 4
      %s43 = int_to_ptr.vmem [resolvable:$true] %s42
      %48 = dma.hbm_to_vmem [thread:$0]  %s2, 256, %s43, [#allocation6], 128, 128, 8
    $region13: #{tpu_custom_call.1} parent=1 // pred_fallthru
      _
    // Predicated region
    $region14: #{tpu_custom_call.1} parent=1 // pred_check
      _
    $region15: #{tpu_custom_call.1} parent=1 // pred_check_branch
      %50 = sbr.rel (0) target = $region17
    $region16: #{tpu_custom_call.1} parent=1 // pred_region
      %s52 = ssub.s32 256, 256
      %53 = vsyncadd [#allocation9], %s52
      %s54 = sshll.u32 [#allocation8], 4
      %s55 = int_to_ptr.vmem [resolvable:$true] %s54
      %60 = dma.hbm_to_vmem [thread:$0]  %s3, 256, %s55, [#allocation9], 128, 128, 8
    $region17: #{tpu_custom_call.1} parent=1 // pred_fallthru
      _
    // Predicated region
    $region18: #{tpu_custom_call.1} parent=1 // pred_check
      _
    $region19: #{tpu_custom_call.1} parent=1 // pred_check_branch
      %62 = sbr.rel (0) target = $region21
    $region20: #{tpu_custom_call.1} parent=1 // pred_region
      %63 = dma.done [#allocation3], 256
    $region21: #{tpu_custom_call.1} parent=1 // pred_fallthru
      _
    // Predicated region
    $region22: #{tpu_custom_call.1} parent=1 // pred_check
      _
    $region23: #{tpu_custom_call.1} parent=1 // pred_check_branch
      %65 = sbr.rel (0) target = $region25
    $region24: #{tpu_custom_call.1} parent=1 // pred_region
      %66 = dma.done [#allocation6], 256
    $region25: #{tpu_custom_call.1} parent=1 // pred_fallthru
      _
    // Predicated region
    $region26: #{tpu_custom_call.1} parent=1 // pred_check
      _
    $region27: #{tpu_custom_call.1} parent=1 // pred_check_branch
      %68 = sbr.rel (0) target = $region29
    $region28: #{tpu_custom_call.1} parent=1 // pred_region
      %69 = dma.done [#allocation6], 256
    $region29: #{tpu_custom_call.1} parent=1 // pred_fallthru
      _
    // Predicated region
    $region30: #{tpu_custom_call.1} parent=1 // pred_check
      _
    $region31: #{tpu_custom_call.1} parent=1 // pred_check_branch
      %71 = sbr.rel (0) target = $region33
    $region32: #{tpu_custom_call.1} parent=1 // pred_region
      %72 = dma.done [#allocation9], 256
    $region33: #{tpu_custom_call.1} parent=1 // pred_fallthru
      _
    %v73 = vld [vmem:[#allocation2] sm:$0xff]
    %v74 = vld [vmem:[#allocation2 + $0x8] sm:$0xff]
    %v75 = vld [vmem:[#allocation5] sm:$0xff]
    %v76 = vld [vmem:[#allocation5 + $0x8] sm:$0xff]
    %v77 = vld [vmem:[#allocation7] sm:$0xff]
    %v78 = vld [vmem:[#allocation7 + $0x8] sm:$0xff]
    %v79 = vld [vmem:[#allocation8] sm:$0xff]
    %v80 = vld [vmem:[#allocation8 + $0x8] sm:$0xff]
    %v81 = vmul.f32 %v75, %v75
    %v82 = vmul.f32 %v76, %v76
    %v83 = vmul.f32 %v79, %v79
    %v84 = vmul.f32 %v80, %v80
    %v85 = vsub.f32 %v73, %v77
    %v86 = vsub.f32 %v74, %v78
    %v87 = vrcp.pop %v75
    %v88 = vmul.f32 %v79, %v87
    %v89 = vrcp.pop %v76
    %v90 = vmul.f32 %v80, %v89
    %v91 = vlog2.pop %v88
    %v92 = vmul.f32 %v91, 0.6931472
    %v93 = vlog2.pop %v90
    %v94 = vmul.f32 %v93, 0.6931472
    %v95 = vmul.f32 %v85, %v85
    %v96 = vmul.f32 %v86, %v86
    %v97 = vadd.f32 %v81, %v95
    %v98 = vadd.f32 %v82, %v96
    %v99 = vmul.f32 %v97, 0.5
    %v100 = vmul.f32 %v98, 0.5
    %v101 = vrcp.pop %v83
    %v102 = vmul.f32 %v99, %v101
    %v103 = vrcp.pop %v84
    %v104 = vmul.f32 %v100, %v103
    %v105 = vadd.f32 %v92, %v102
    %v106 = vadd.f32 %v94, %v104
    %v107 = vsub.f32 %v105, 0.5
    %v108 = vsub.f32 %v106, 0.5
    %v109 = vadd.f32 %v107, %v108
    %110 = vst [vmem:[#allocation10] sm:$0xff] %v109
    // Predicated region
    $region34: #{tpu_custom_call.1} parent=1 // pred_check
      _
    $region35: #{tpu_custom_call.1} parent=1 // pred_check_branch
      %112 = sbr.rel (0) target = $region37
    $region36: #{tpu_custom_call.1} parent=1 // pred_region
      %s114 = ssub.s32 128, 128
      %115 = vsyncadd [#allocation4], %s114
      %s117 = sshll.u32 [#allocation10], 4
      %s118 = int_to_ptr.vmem [resolvable:$true] %s117
      %120 = dma.vmem_to_hbm [thread:$0]  %s118, 128, %s4, [#allocation4]
    $region37: #{tpu_custom_call.1} parent=1 // pred_fallthru
      _
    // Predicated region
    $region38: #{tpu_custom_call.1} parent=1 // pred_check
      _
    $region39: #{tpu_custom_call.1} parent=1 // pred_check_branch
      %122 = sbr.rel (0) target = $region41
    $region40: #{tpu_custom_call.1} parent=1 // pred_region
      %123 = dma.done [#allocation4], 128
    $region41: #{tpu_custom_call.1} parent=1 // pred_fallthru
      _
    %124 = vsyncpa [#allocation3], 1
    %125 = vsyncpa [#allocation6], 1
    %126 = vsyncpa [#allocation9], 1
    %127 = vsyncpa [#allocation4], 1

</llo_original>
